<compile_context>
chip_gen: v6e
topology: v6e:2x2x1
jax: 0.10.0
libtpu: 0.0.40
codegen_flags: <defaults>
</compile_context>

<pallas_src>
import functools

import jax
import jax.numpy as jnp
from jax import lax
from jax.experimental import pallas as pl
from jax.experimental.pallas import tpu as pltpu


def _swav_loss_kernel(assign_ref,     # SMEM (n_assign,) int32 (scalar prefetch)
                      asg_ref,        # VMEM (B, Kp): output slice of crops_for_assign[ci]
                      view_ref,       # VMEM (B, Kp): output slice of view v
                      loss_ref,       # VMEM (1, 1) f32: resident loss accumulator (output)
                      lse_ref,        # VMEM scratch (T, 1, 1) f32: per-view sum_b logsumexp
                      q_ref,          # VMEM scratch (B, Kp) f32: sinkhorn assignments
                      *, batch_size, num_protos, padded_protos, total_crops,
                      n_assign, temperature, epsilon, sinkhorn_iterations):
    ci = pl.program_id(0)             # index into crops_for_assign
    v = pl.program_id(1)              # view crop id
    crop_id = assign_ref[ci]

    # --- zero the resident loss accumulator on the very first grid step ---
    @pl.when((ci == 0) & (v == 0))
    def _():
        loss_ref[...] = jnp.zeros_like(loss_ref)

    # --- sinkhorn: once per assign crop, on the first view step of this ci ---
    @pl.when(v == 0)
    def _():
        out = asg_ref[...].astype(jnp.float32)                   # [B, Kp]
        # Q is globally normalized right after, so subtracting the max is exact
        # and guards exp() against overflow (epsilon is small).
        m = jnp.max(out)
        qt = jnp.exp((out - m) / jnp.float32(epsilon))           # = Q.T, [B, Kp]
        qt = qt / jnp.sum(qt)

        r = jnp.float32(1.0 / num_protos)                        # rows of Q (prototypes)
        c = jnp.float32(1.0 / batch_size)                        # cols of Q (samples)
        if padded_protos != num_protos:
            lane = lax.broadcasted_iota(jnp.int32, (1, padded_protos), 1)
            lane_valid = lane < num_protos

        def body(_, qt):
            u = jnp.sum(qt, axis=0, keepdims=True)               # sum(Q, dim=1) -> [1, Kp]
            if padded_protos != num_protos:
                # Padded lanes are exactly 0; avoid 0 * inf = nan.
                u = jnp.where(lane_valid, u, jnp.float32(1.0))
            qt = qt * (r / u)
            col = jnp.sum(qt, axis=1, keepdims=True)             # sum(Q, dim=0) -> [B, 1]
            qt = qt * (c / col)
            return qt

        qt = lax.fori_loop(0, sinkhorn_iterations, body, qt, unroll=True)
        # (Q / sum(Q, dim=0, keepdim=True)).t()  ->  qt / sum(qt, axis=1); rows sum to 1.
        # NOTE: pl.reciprocal(..., approx=True) would move these divides to the
        # otherwise-free EUP slot, but its approximation error is not safely
        # inside the 1e-4 check tolerance, so exact division is kept.
        q_ref[...] = qt / jnp.sum(qt, axis=1, keepdims=True)

    # --- per-view logsumexp of output[v]/temperature: computed once & cached ---
    @pl.when(ci == 0)
    def _():
        logits = view_ref[...].astype(jnp.float32) / jnp.float32(temperature)
        m = jnp.max(logits, axis=1, keepdims=True)                           # [B, 1]
        lse = m + jnp.log(jnp.sum(jnp.exp(logits - m), axis=1, keepdims=True))
        lse_ref[v] = jnp.sum(lse, keepdims=True)                             # (1, 1)

    # --- cross-entropy term for every view other than the assign crop ---
    @pl.when(v != crop_id)
    def _():
        outv = view_ref[...].astype(jnp.float32)                             # [B, Kp]
        # -mean_b sum_k q*log softmax(out_v/temp)
        #    = mean_b(lse) - (1/(B*temp)) * sum_{b,k} q*out_v   (rows of q sum to 1)
        dot = jnp.sum(q_ref[...] * outv, keepdims=True)                      # (1, 1)
        contrib = (lse_ref[v] * jnp.float32(1.0 / batch_size)
                   - dot * jnp.float32(1.0 / (batch_size * temperature)))
        scale = jnp.float32(1.0 / ((total_crops - 1) * n_assign))
        loss_ref[...] = loss_ref[...] + contrib * scale


def swav_loss(output, embedding, prototype_weights, batch_size, *, temperature,
              crops_for_assign, nmb_crops, sinkhorn_iterations, epsilon,
              queue=None, use_queue=False):
    """JAX/Pallas equivalent of SWAVLoss.forward (queue=None, single-device path)."""
    del embedding, prototype_weights   # only used by the (unimplemented) queue path
    total_crops = int(sum(nmb_crops))
    n_assign = len(crops_for_assign)
    num_protos = int(output.shape[1])
    assert output.shape[0] == total_crops * batch_size
    assert batch_size % 8 == 0, "batch_size must be a multiple of 8 (sublane tiling)"

    # Pad the prototype/lane dim to a multiple of 128 so every op runs on full
    # vregs; padded lanes are masked inside the kernel (padded exp() == 0).
    padded = ((num_protos + 127) // 128) * 128
    if padded != num_protos:
        pad = jnp.full((output.shape[0], padded - num_protos), -1e30,
                       dtype=output.dtype)
        output = jnp.concatenate([output, pad], axis=1)
    # NOTE: no host-side astype(float32); slices are cast in-kernel so a bf16
    # `output` only moves bf16 bytes over HBM.

    assign_idx = jnp.asarray(crops_for_assign, dtype=jnp.int32)

    kernel = functools.partial(
        _swav_loss_kernel,
        batch_size=int(batch_size),
        num_protos=num_protos,
        padded_protos=padded,
        total_crops=total_crops,
        n_assign=n_assign,
        temperature=float(temperature),
        epsilon=float(epsilon),
        sinkhorn_iterations=int(sinkhorn_iterations),
    )

    grid_spec = pltpu.PrefetchScalarGridSpec(
        num_scalar_prefetch=1,
        grid=(n_assign, total_crops),
        in_specs=[
            # Assign-crop slice: block row index comes from the prefetched
            # crops_for_assign; constant along the v axis -> fetched once per ci.
            pl.BlockSpec((batch_size, padded), lambda ci, v, assign: (assign[ci], 0)),
            # View slice for the current v.
            pl.BlockSpec((batch_size, padded), lambda ci, v, assign: (v, 0)),
        ],
        out_specs=pl.BlockSpec((1, 1), lambda ci, v, assign: (0, 0)),
        scratch_shapes=[
            pltpu.VMEM((total_crops, 1, 1), jnp.float32),   # cached sum_b logsumexp per view
            pltpu.VMEM((batch_size, padded), jnp.float32),  # sinkhorn q for current assign crop
        ],
    )

    loss = pl.pallas_call(
        kernel,
        out_shape=jax.ShapeDtypeStruct((1, 1), jnp.float32),
        grid_spec=grid_spec,
        # Loss accumulates across both axes and the lse cache is reused across
        # ci, so both axes are "arbitrary".  (On v7x one could emit per-ci
        # partial losses and mark ci "parallel" to split over both TensorCores,
        # at the cost of recomputing the per-view logsumexp per core.)
        compiler_params=pltpu.CompilerParams(
            dimension_semantics=("arbitrary", "arbitrary")),
        # VMEM residency is only a handful of [B, Kp] tiles, so the default
        # scoped VMEM limit suffices even at production shapes; raise
        # vmem_limit_bytes here only if B*Kp grows very large.
    )(assign_idx, output, output)

    return loss[0, 0], queue, use_queue


def _reference(output, batch_size, *, temperature, crops_for_assign, nmb_crops,
               sinkhorn_iterations, epsilon):
    """Pure-JAX reference matching the PyTorch module (queue=None path)."""
    output = output.astype(jnp.float32)
    total_crops = int(sum(nmb_crops))
    loss = 0.0
    for crop_id in crops_for_assign:
        out = output[batch_size * crop_id:batch_size * (crop_id + 1)]
        Q = jnp.exp(out / epsilon).T                        # [K, B]
        Q = Q / jnp.sum(Q)
        K, B = Q.shape
        r = jnp.ones((K,)) / K
        c = jnp.ones((B,)) / B
        for _ in range(sinkhorn_iterations):
            u = jnp.sum(Q, axis=1)
            Q = Q * (r / u)[:, None]
            Q = Q * (c / jnp.sum(Q, axis=0))[None, :]
        q = (Q / jnp.sum(Q, axis=0, keepdims=True)).T       # [B, K]
        subloss = 0.0
        for v in range(total_crops):
            if v == crop_id:
                continue
            p = jax.nn.softmax(output[batch_size * v:batch_size * (v + 1)] / temperature,
                               axis=1)
            subloss = subloss - jnp.mean(jnp.sum(q * jnp.log(p), axis=1))
        loss = loss + subloss / (total_crops - 1)
    return loss / len(crops_for_assign)


if __name__ == "__main__":
    # Config (single device -> local sinkhorn, no queue).
    temperature = 0.1
    crops_for_assign = (0, 1)
    nmb_crops = (2, 2)                  # total of 4 crops
    sinkhorn_iterations = 3
    epsilon = 0.05

    batch_size = 8
    feat_dim = 16
    total_crops = sum(nmb_crops)

    # Second case (K=120) exercises the lane-padding + masking path.
    for num_prototypes in (128, 120):
        key = jax.random.PRNGKey(0)
        k_out, k_emb, k_proto = jax.random.split(key, 3)
        output = jax.random.normal(
            k_out, (total_crops * batch_size, num_prototypes), dtype=jnp.float32) * 0.1
        embedding = jax.random.normal(
            k_emb, (total_crops * batch_size, feat_dim), dtype=jnp.float32)
        prototype_weights = jax.random.normal(
            k_proto, (num_prototypes, feat_dim), dtype=jnp.float32) * 0.02

        loss, queue, use_queue = swav_loss(
            output, embedding, prototype_weights, batch_size,
            temperature=temperature, crops_for_assign=crops_for_assign,
            nmb_crops=nmb_crops, sinkhorn_iterations=sinkhorn_iterations,
            epsilon=epsilon, queue=None, use_queue=False)
        loss = jax.block_until_ready(loss)

        ref = _reference(output, batch_size, temperature=temperature,
                         crops_for_assign=crops_for_assign, nmb_crops=nmb_crops,
                         sinkhorn_iterations=sinkhorn_iterations, epsilon=epsilon)
        ref = jax.block_until_ready(ref)

        assert jnp.isfinite(loss), num_prototypes
        assert abs(float(loss) - float(ref)) < 1e-4, (num_prototypes, float(loss), float(ref))

    print("KERNEL_OK")
</pallas_src>

<mosaic_0001>
module attributes {stable_mosaic.version = 11 : i64} {
  func.func @_swav_loss_kernel(%arg0: i32, %arg1: i32, %arg2: memref<2xi32, #tpu.memory_space<smem>>, %arg3: memref<8x128xf32, #tpu.memory_space<vmem>>, %arg4: memref<8x128xf32, #tpu.memory_space<vmem>>, %arg5: memref<1x1xf32, #tpu.memory_space<vmem>>, %arg6: memref<4x1x1xf32, #tpu.memory_space<vmem>>, %arg7: memref<8x128xf32, #tpu.memory_space<vmem>>) attributes {dimension_semantics = [#tpu.dimension_semantics<arbitrary>, #tpu.dimension_semantics<arbitrary>], iteration_bounds = array<i64: 2, 4>, scalar_prefetch = 1 : i64, scratch_operands = 2 : i64, tpu.core_type = #tpu.core_type<tc>, window_params = [{transform_indices = @transform_0, window_bounds = array<i64: 8, 128>}, {transform_indices = @transform_1, window_bounds = array<i64: 8, 128>}, {pipeline_mode = #tpu.pipeline_mode<synchronous>, transform_indices = @transform_2, window_bounds = array<i64: 1, 1>}]} {
    %0 = arith.index_cast %arg0 : i32 to index
    %1 = memref.load %arg2[%0] : memref<2xi32, #tpu.memory_space<smem>>
    %c0_i32 = arith.constant 0 : i32
    %2 = arith.cmpi eq, %arg0, %c0_i32 : i32
    %c0_i32_0 = arith.constant 0 : i32
    %3 = arith.cmpi eq, %arg1, %c0_i32_0 : i32
    %4 = arith.andi %2, %3 : i1
    %5 = arith.extui %4 : i1 to i32
    %c0_i32_1 = arith.constant 0 : i32
    %6 = arith.cmpi ne, %5, %c0_i32_1 : i32
    scf.if %6 {
      %cst = arith.constant 0.000000e+00 : f32
      %16 = vector.broadcast %cst : f32 to vector<1x1xf32>
      %c0 = arith.constant 0 : index
      %c0_7 = arith.constant 0 : index
      %17 = vector.load %arg5[%c0, %c0_7] : memref<1x1xf32, #tpu.memory_space<vmem>>, vector<1x1xf32>
      tpu.vector_store %arg5[%c0, %c0_7], %16 {strides = array<i32>} : memref<1x1xf32, #tpu.memory_space<vmem>>, vector<1x1xf32>,
    } else {
    }
    %c0_i32_2 = arith.constant 0 : i32
    %7 = arith.cmpi eq, %arg1, %c0_i32_2 : i32
    %8 = arith.extui %7 : i1 to i32
    %c0_i32_3 = arith.constant 0 : i32
    %9 = arith.cmpi ne, %8, %c0_i32_3 : i32
    scf.if %9 {
      %c0 = arith.constant 0 : index
      %c0_7 = arith.constant 0 : index
      %16 = vector.load %arg3[%c0, %c0_7] : memref<8x128xf32, #tpu.memory_space<vmem>>, vector<8x128xf32>
      %17 = vector.shape_cast %16 : vector<8x128xf32> to vector<1x8x128xf32>
      %cst = arith.constant dense<0xFF800000> : vector<1xf32>
      %18 = vector.multi_reduction <maximumf>, %17, %cst [1, 2] : vector<1x8x128xf32> to vector<1xf32>
      %19 = vector.shape_cast %18 : vector<1xf32> to vector<1x1x1xf32>
      %20 = vector.extract %19[0, 0, 0] : f32 from vector<1x1x1xf32>
      %21 = vector.broadcast %20 : f32 to vector<8x128xf32>
      %22 = arith.subf %16, %21 : vector<8x128xf32>
      %cst_8 = arith.constant 5.000000e-02 : f32
      %23 = vector.broadcast %cst_8 : f32 to vector<8x128xf32>
      %24 = arith.divf %22, %23 : vector<8x128xf32>
      %25 = math.exp %24 : vector<8x128xf32>
      %26 = vector.shape_cast %25 : vector<8x128xf32> to vector<1x8x128xf32>
      %cst_9 = arith.constant dense<0.000000e+00> : vector<1xf32>
      %27 = vector.multi_reduction <add>, %26, %cst_9 [1, 2] : vector<1x8x128xf32> to vector<1xf32>
      %28 = vector.shape_cast %27 : vector<1xf32> to vector<1x1x1xf32>
      %29 = vector.extract %28[0, 0, 0] : f32 from vector<1x1x1xf32>
      %30 = vector.broadcast %29 : f32 to vector<8x128xf32>
      %31 = arith.divf %25, %30 : vector<8x128xf32>
      %cst_10 = arith.constant 7.812500e-03 : f32
      %cst_11 = arith.constant 1.250000e-01 : f32
      %c0_i32_12 = arith.constant 0 : i32
      %cst_13 = arith.constant dense<0.000000e+00> : vector<128xf32>
      %32 = vector.multi_reduction <add>, %31, %cst_13 [0] : vector<8x128xf32> to vector<128xf32>
      %33 = vector.shape_cast %32 : vector<128xf32> to vector<1x128xf32>
      %34 = vector.broadcast %cst_10 : f32 to vector<1x128xf32>
      %35 = arith.divf %34, %33 : vector<1x128xf32>
      %36 = vector.broadcast %35 : vector<1x128xf32> to vector<8x128xf32>
      %37 = arith.mulf %31, %36 : vector<8x128xf32>
      %cst_14 = arith.constant dense<0.000000e+00> : vector<8xf32>
      %38 = vector.multi_reduction <add>, %37, %cst_14 [1] : vector<8x128xf32> to vector<8xf32>
      %39 = vector.shape_cast %38 : vector<8xf32> to vector<8x1xf32>
      %40 = vector.broadcast %cst_11 : f32 to vector<8x1xf32>
      %41 = arith.divf %40, %39 : vector<8x1xf32>
      %42 = vector.broadcast %41 : vector<8x1xf32> to vector<8x128xf32>
      %43 = arith.mulf %37, %42 : vector<8x128xf32>
      %c1_i32 = arith.constant 1 : i32
      %cst_15 = arith.constant dense<0.000000e+00> : vector<128xf32>
      %44 = vector.multi_reduction <add>, %43, %cst_15 [0] : vector<8x128xf32> to vector<128xf32>
      %45 = vector.shape_cast %44 : vector<128xf32> to vector<1x128xf32>
      %46 = vector.broadcast %cst_10 : f32 to vector<1x128xf32>
      %47 = arith.divf %46, %45 : vector<1x128xf32>
      %48 = vector.broadcast %47 : vector<1x128xf32> to vector<8x128xf32>
      %49 = arith.mulf %43, %48 : vector<8x128xf32>
      %cst_16 = arith.constant dense<0.000000e+00> : vector<8xf32>
      %50 = vector.multi_reduction <add>, %49, %cst_16 [1] : vector<8x128xf32> to vector<8xf32>
      %51 = vector.shape_cast %50 : vector<8xf32> to vector<8x1xf32>
      %52 = vector.broadcast %cst_11 : f32 to vector<8x1xf32>
      %53 = arith.divf %52, %51 : vector<8x1xf32>
      %54 = vector.broadcast %53 : vector<8x1xf32> to vector<8x128xf32>
      %55 = arith.mulf %49, %54 : vector<8x128xf32>
      %c2_i32 = arith.constant 2 : i32
      %cst_17 = arith.constant dense<0.000000e+00> : vector<128xf32>
      %56 = vector.multi_reduction <add>, %55, %cst_17 [0] : vector<8x128xf32> to vector<128xf32>
      %57 = vector.shape_cast %56 : vector<128xf32> to vector<1x128xf32>
      %58 = vector.broadcast %cst_10 : f32 to vector<1x128xf32>
      %59 = arith.divf %58, %57 : vector<1x128xf32>
      %60 = vector.broadcast %59 : vector<1x128xf32> to vector<8x128xf32>
      %61 = arith.mulf %55, %60 : vector<8x128xf32>
      %cst_18 = arith.constant dense<0.000000e+00> : vector<8xf32>
      %62 = vector.multi_reduction <add>, %61, %cst_18 [1] : vector<8x128xf32> to vector<8xf32>
      %63 = vector.shape_cast %62 : vector<8xf32> to vector<8x1xf32>
      %64 = vector.broadcast %cst_11 : f32 to vector<8x1xf32>
      %65 = arith.divf %64, %63 : vector<8x1xf32>
      %66 = vector.broadcast %65 : vector<8x1xf32> to vector<8x128xf32>
      %67 = arith.mulf %61, %66 : vector<8x128xf32>
      %cst_19 = arith.constant dense<0.000000e+00> : vector<8xf32>
      %68 = vector.multi_reduction <add>, %67, %cst_19 [1] : vector<8x128xf32> to vector<8xf32>
      %69 = vector.shape_cast %68 : vector<8xf32> to vector<8x1xf32>
      %70 = vector.broadcast %69 : vector<8x1xf32> to vector<8x128xf32>
      %71 = arith.divf %67, %70 : vector<8x128xf32>
      %c0_20 = arith.constant 0 : index
      %c0_21 = arith.constant 0 : index
      %72 = vector.load %arg7[%c0_20, %c0_21] : memref<8x128xf32, #tpu.memory_space<vmem>>, vector<8x128xf32>
      tpu.vector_store %arg7[%c0_20, %c0_21], %71 {strides = array<i32>} : memref<8x128xf32, #tpu.memory_space<vmem>>, vector<8x128xf32>,
    } else {
    }
    %c0_i32_4 = arith.constant 0 : i32
    %10 = arith.cmpi eq, %arg0, %c0_i32_4 : i32
    %11 = arith.extui %10 : i1 to i32
    %c0_i32_5 = arith.constant 0 : i32
    %12 = arith.cmpi ne, %11, %c0_i32_5 : i32
    scf.if %12 {
      %c0 = arith.constant 0 : index
      %c0_7 = arith.constant 0 : index
      %16 = vector.load %arg4[%c0, %c0_7] : memref<8x128xf32, #tpu.memory_space<vmem>>, vector<8x128xf32>
      %cst = arith.constant 1.000000e-01 : f32
      %17 = vector.broadcast %cst : f32 to vector<8x128xf32>
      %18 = arith.divf %16, %17 : vector<8x128xf32>
      %cst_8 = arith.constant dense<0xFF800000> : vector<8xf32>
      %19 = vector.multi_reduction <maximumf>, %18, %cst_8 [1] : vector<8x128xf32> to vector<8xf32>
      %20 = vector.shape_cast %19 : vector<8xf32> to vector<8x1xf32>
      %21 = vector.broadcast %20 : vector<8x1xf32> to vector<8x128xf32>
      %22 = arith.subf %18, %21 : vector<8x128xf32>
      %23 = math.exp %22 : vector<8x128xf32>
      %cst_9 = arith.constant dense<0.000000e+00> : vector<8xf32>
      %24 = vector.multi_reduction <add>, %23, %cst_9 [1] : vector<8x128xf32> to vector<8xf32>
      %25 = vector.shape_cast %24 : vector<8xf32> to vector<8x1xf32>
      %26 = math.log %25 : vector<8x1xf32>
      %27 = arith.addf %20, %26 : vector<8x1xf32>
      %28 = vector.shape_cast %27 : vector<8x1xf32> to vector<1x8x1xf32>
      %cst_10 = arith.constant dense<0.000000e+00> : vector<1xf32>
      %29 = vector.multi_reduction <add>, %28, %cst_10 [1, 2] : vector<1x8x1xf32> to vector<1xf32>
      %30 = vector.shape_cast %29 : vector<1xf32> to vector<1x1x1xf32>
      %31 = vector.extract %30[0, 0, 0] : f32 from vector<1x1x1xf32>
      %32 = vector.broadcast %31 : f32 to vector<1x1xf32>
      %33 = arith.index_cast %arg1 : i32 to index
      %c0_11 = arith.constant 0 : index
      %c0_12 = arith.constant 0 : index
      %34 = vector.load %arg6[%33, %c0_11, %c0_12] : memref<4x1x1xf32, #tpu.memory_space<vmem>>, vector<1x1x1xf32>
      %35 = vector.shape_cast %34 : vector<1x1x1xf32> to vector<1x1xf32>
      %36 = vector.shape_cast %32 : vector<1x1xf32> to vector<1x1x1xf32>
      tpu.vector_store %arg6[%33, %c0_11, %c0_12], %36 {strides = array<i32>} : memref<4x1x1xf32, #tpu.memory_space<vmem>>, vector<1x1x1xf32>,
    } else {
    }
    %13 = arith.cmpi ne, %arg1, %1 : i32
    %14 = arith.extui %13 : i1 to i32
    %c0_i32_6 = arith.constant 0 : i32
    %15 = arith.cmpi ne, %14, %c0_i32_6 : i32
    scf.if %15 {
      %c0 = arith.constant 0 : index
      %c0_7 = arith.constant 0 : index
      %16 = vector.load %arg4[%c0, %c0_7] : memref<8x128xf32, #tpu.memory_space<vmem>>, vector<8x128xf32>
      %c0_8 = arith.constant 0 : index
      %c0_9 = arith.constant 0 : index
      %17 = vector.load %arg7[%c0_8, %c0_9] : memref<8x128xf32, #tpu.memory_space<vmem>>, vector<8x128xf32>
      %18 = arith.mulf %17, %16 : vector<8x128xf32>
      %19 = vector.shape_cast %18 : vector<8x128xf32> to vector<1x8x128xf32>
      %cst = arith.constant dense<0.000000e+00> : vector<1xf32>
      %20 = vector.multi_reduction <add>, %19, %cst [1, 2] : vector<1x8x128xf32> to vector<1xf32>
      %21 = vector.shape_cast %20 : vector<1xf32> to vector<1x1x1xf32>
      %22 = vector.extract %21[0, 0, 0] : f32 from vector<1x1x1xf32>
      %23 = vector.broadcast %22 : f32 to vector<1x1xf32>
      %24 = arith.index_cast %arg1 : i32 to index
      %c0_10 = arith.constant 0 : index
      %c0_11 = arith.constant 0 : index
      %25 = vector.load %arg6[%24, %c0_10, %c0_11] : memref<4x1x1xf32, #tpu.memory_space<vmem>>, vector<1x1x1xf32>
      %26 = vector.shape_cast %25 : vector<1x1x1xf32> to vector<1x1xf32>
      %cst_12 = arith.constant 1.250000e-01 : f32
      %27 = vector.broadcast %cst_12 : f32 to vector<1x1xf32>
      %28 = arith.mulf %26, %27 : vector<1x1xf32>
      %cst_13 = arith.constant 1.250000e+00 : f32
      %29 = vector.broadcast %cst_13 : f32 to vector<1x1xf32>
      %30 = arith.mulf %23, %29 : vector<1x1xf32>
      %31 = arith.subf %28, %30 : vector<1x1xf32>
      %c0_14 = arith.constant 0 : index
      %c0_15 = arith.constant 0 : index
      %32 = vector.load %arg5[%c0_14, %c0_15] : memref<1x1xf32, #tpu.memory_space<vmem>>, vector<1x1xf32>
      %cst_16 = arith.constant 0.166666672 : f32
      %33 = vector.broadcast %cst_16 : f32 to vector<1x1xf32>
      %34 = arith.mulf %31, %33 : vector<1x1xf32>
      %35 = arith.addf %32, %34 : vector<1x1xf32>
      %c0_17 = arith.constant 0 : index
      %c0_18 = arith.constant 0 : index
      %36 = vector.load %arg5[%c0_17, %c0_18] : memref<1x1xf32, #tpu.memory_space<vmem>>, vector<1x1xf32>
      tpu.vector_store %arg5[%c0_17, %c0_18], %35 {strides = array<i32>} : memref<1x1xf32, #tpu.memory_space<vmem>>, vector<1x1xf32>,
    } else {
    }
    return
  }
  func.func @transform_0(%arg0: i32, %arg1: i32, %arg2: memref<2xi32, #tpu.memory_space<smem>>) -> (i32, i32) {
    %0 = arith.index_cast %arg0 : i32 to index
    %1 = memref.load %arg2[%0] : memref<2xi32, #tpu.memory_space<smem>>
    %c0_i32 = arith.constant 0 : i32
    %c0_i32_0 = arith.constant 0 : i32
    return %1, %c0_i32 : i32, i32
  }
  func.func @transform_1(%arg0: i32, %arg1: i32, %arg2: memref<2xi32, #tpu.memory_space<smem>>) -> (i32, i32) {
    %c0_i32 = arith.constant 0 : i32
    %c0_i32_0 = arith.constant 0 : i32
    return %arg1, %c0_i32 : i32, i32
  }
  func.func @transform_2(%arg0: i32, %arg1: i32, %arg2: memref<2xi32, #tpu.memory_space<smem>>) -> (i32, i32) {
    %c0_i32 = arith.constant 0 : i32
    %c0_i32_0 = arith.constant 0 : i32
    %c0_i32_1 = arith.constant 0 : i32
    return %c0_i32, %c0_i32_0 : i32, i32
  }
}

</mosaic_0001>

<llo_original>
// kernel: tpu_custom_call.1
$region0: #{tpu_custom_call.1}
  #allocation0 [shape = 'u32[]', space=smem, size = 0x4, offset = 0x4, fixed_abs, tag = 'smem constant byte address 0x4 - core index']
  #allocation1 [shape = 'u32[144,128]{1,0:T(1,128)}', space=vmem, size = 0x12000, scoped, tag = 'internal scratch']
  #allocation2 [shape = 'f32[4,1,1]{2,1,0:T(1,128)}', space=vmem, size = 0x800, scoped, tag = 'scratch operand']
  #allocation3 [shape = 'f32[8,128]{1,0:T(8,128)}', space=vmem, size = 0x1000, scoped, tag = 'scratch operand']
  #allocation4 [shape = 's32[1]{0}', space=sflag, size = 0x4, scoped, tag = 'scoped memory for tpu_custom_call.1']
  #allocation5 [shape = 'u8[512]{0}', space=smem, size = 0x200, scoped, tag = 'prefetched SMEM operand 0']
  %s0 = inlined_call_operand.hbm [shape: s32[2], index: 0, kind: input, shape index: {}]
  %s1 = inlined_call_operand.hbm [shape: f32[32,128], index: 1, kind: input, shape index: {}]
  %s2 = inlined_call_operand.hbm [shape: f32[32,128], index: 2, kind: input, shape index: {}]
  %s3 = inlined_call_operand.hbm [shape: f32[1,1], index: 3, kind: output, shape index: {}]
  %s4 = sld [smem:[#allocation0]]
  $region65: #{tpu_custom_call.1} parent=0
    _
  %s6 = ssub.s32 1, %s4
  %s7 = scalar_select 0, %s6, %s4
  %9 = dma.hbm_to_smem %s0, 16, [#allocation5], [#allocation4]
  %10 = dma.done [#allocation4], 16
  %11 = sfence
  $region1: #{tpu_custom_call.1} parent=0
    #allocation6 [shape = 'u8[8192]{0}', space=vmem, size = 0x2000, scoped, tag = 'input window, operand 1']
    #allocation7 [shape = 's32[2]{0}', space=sflag, size = 0x8, scoped, tag = 'scoped memory for tpu_custom_call.1']
    #allocation8 [shape = 's32[2]{0}', space=sflag, size = 0x8, scoped, tag = 'scoped memory for tpu_custom_call.1']
    #allocation9 [shape = 'u8[8192]{0}', space=vmem, size = 0x2000, scoped, tag = 'input window, operand 2']
    #allocation10 [shape = 's32[2]{0}', space=sflag, size = 0x8, scoped, tag = 'scoped memory for tpu_custom_call.1']
    #allocation11 [shape = 'u8[512]{0}', space=vmem, size = 0x400, scoped, tag = 'output window, operand 0, single buffered']
    %12 = vsyncpa [#allocation7], 0
    %s13 = scalar_lea.sflag [#allocation7], 1
    %14 = vsyncpa %s13, 0
    %15 = vsyncpa [#allocation10], 0
    %s16 = scalar_lea.sflag [#allocation10], 1
    %17 = vsyncpa %s16, 0
    %18 = vsyncpa [#allocation8], 0
    loop: start=0, step=1, limit=10
    $region2: #{tpu_custom_call.1} parent=1 // loop_pre_header
      _
    $region3: #{tpu_custom_call.1} parent=1 // loop_header
      %s20 = sphi 0, %s24
      %p21 = scmp.ge.s32.totalorder %s20, 10
      %s27 = sphi 0, %s39
      %s28 = sphi 0, %s35
      %s29 = sphi 0, %s27
      %s30 = sphi 0, %s28
      %s31 = sphi 0, %s29
      %s32 = sphi 0, %s30
      %s44 = sphi 0, %s46
      %s47 = sphi 0, %s44
      %s48 = sphi 0, %s47
      %s64 = sphi 0, %s48
      %s70 = sphi 0, %s72
      %s73 = sphi 0, %s70
      %s74 = sphi 0, %s73
      %s90 = sphi 0, %s74
      %s94 = sphi 0, %s94
      %s96 = sphi 0, %s94
      %s97 = sphi 0, %s96
      %s111 = sphi 0, %s97
    $region4: #{tpu_custom_call.1} parent=1 // loop_header_branch
      %23 = sbr.rel (%p21) target = $region8
    $region5: #{tpu_custom_call.1} parent=1 // loop_body
      %s25 = ssub.s32 %s20, 1
      %s26 = ssub.s32 %s20, 2
      %s33 = sadd.s32 1, %s28
      %p34 = scmp.ge.s32.totalorder %s33, 4
      %s35 = scalar_select %p34, 0, %s33
      %s36 = sadd.s32 1, %s27
      %s37 = scalar_select %p34, %s36, %s27
      %p38 = scmp.ge.s32.totalorder %s37, 2
      %s39 = scalar_select %p38, 0, %s37
      %s40 = sld [smem:[#allocation5 + %s27]]
      %s41 = sld [smem:[#allocation5 + %s39]]
      %s42 = ssub.s32 %s40, %s41
      %p43 = scmp.eq.s32.totalorder %s42, 0
      %s45 = sadd.s32 %s44, 1
      %s46 = scalar_select %p43, %s44, %s45
      %p49 = pneg %p43
      %p50 = scmp.eq.s32.totalorder %s20, 7
      %p51 = por %p49, %p50
      %p52 = scmp.ne.s32.totalorder %s44, %s47
      %p53 = scmp.eq.s32.totalorder %s20, 0
      %p54 = por %p52, %p53
      %p55 = scmp.ne.s32.totalorder %s44, %s47
      %p56 = scmp.eq.s32.totalorder %s25, 7
      %p57 = por %p55, %p56
      %p58 = scmp.ne.s32.totalorder %s47, %s48
      %p59 = scmp.eq.s32.totalorder %s25, 0
      %p60 = por %p58, %p59
      %p61 = scmp.ne.s32.totalorder %s47, %s48
      %p62 = scmp.eq.s32.totalorder %s26, 7
      %p63 = por %p61, %p62
      %p65 = scmp.ne.s32.totalorder %s48, %s64
      %p66 = scmp.eq.s32.totalorder %s26, 0
      %p67 = por %p65, %p66
      %s68 = ssub.s32 %s28, %s35
      %p69 = scmp.eq.s32.totalorder %s68, 0
      %s71 = sadd.s32 %s70, 1
      %s72 = scalar_select %p69, %s70, %s71
      %p75 = pneg %p69
      %p76 = scmp.eq.s32.totalorder %s20, 7
      %p77 = por %p75, %p76
      %p78 = scmp.ne.s32.totalorder %s70, %s73
      %p79 = scmp.eq.s32.totalorder %s20, 0
      %p80 = por %p78, %p79
      %p81 = scmp.ne.s32.totalorder %s70, %s73
      %p82 = scmp.eq.s32.totalorder %s25, 7
      %p83 = por %p81, %p82
      %p84 = scmp.ne.s32.totalorder %s73, %s74
      %p85 = scmp.eq.s32.totalorder %s25, 0
      %p86 = por %p84, %p85
      %p87 = scmp.ne.s32.totalorder %s73, %s74
      %p88 = scmp.eq.s32.totalorder %s26, 7
      %p89 = por %p87, %p88
      %p91 = scmp.ne.s32.totalorder %s74, %s90
      %p92 = scmp.eq.s32.totalorder %s26, 0
      %p93 = por %p91, %p92
      %s95 = sadd.s32 %s94, 1
      %p98 = scmp.eq.s32.totalorder %s20, 7
      %p99 = scmp.ne.s32.totalorder %s94, %s96
      %p100 = scmp.eq.s32.totalorder %s20, 0
      %p101 = por %p99, %p100
      %p102 = scmp.ne.s32.totalorder %s94, %s96
      %p103 = scmp.eq.s32.totalorder %s25, 7
      %p104 = por %p102, %p103
      %p105 = scmp.ne.s32.totalorder %s96, %s97
      %p106 = scmp.eq.s32.totalorder %s25, 0
      %p107 = por %p105, %p106
      %p108 = scmp.ne.s32.totalorder %s96, %s97
      %p109 = scmp.eq.s32.totalorder %s26, 7
      %p110 = por %p108, %p109
      %p112 = scmp.ne.s32.totalorder %s97, %s111
      %p113 = scmp.eq.s32.totalorder %s26, 0
      %p114 = por %p112, %p113
      %p115 = scmp.le.s32.totalorder 1, %s20
      %p116 = scmp.lt.s32.totalorder %s20, 9
      %p117 = pnand %p115, %p116
      %p118 = pneg %p117
      // Predicated region
      $region9: #{tpu_custom_call.1} parent=5 // pred_check
        _
      $region10: #{tpu_custom_call.1} parent=5 // pred_check_branch
        %120 = sbr.rel (%p117) target = $region12
      $region11: #{tpu_custom_call.1} parent=5 // pred_region
        %s121 = ssub.s32 %s20, 1
      $region12: #{tpu_custom_call.1} parent=5 // pred_fallthru
        _
      %p122 = scmp.lt.s32.totalorder %s20, 8
      // Predicated region
      $region13: #{tpu_custom_call.1} parent=5 // pred_check
        %p123 = pneg %p122
      $region14: #{tpu_custom_call.1} parent=5 // pred_check_branch
        %125 = sbr.rel (%p123) target = $region16
      $region15: #{tpu_custom_call.1} parent=5 // pred_region
        // Predicated region
        $region17: #{tpu_custom_call.1} parent=15 // pred_check
          %p126 = pneg %p54
        $region18: #{tpu_custom_call.1} parent=15 // pred_check_branch
          %128 = sbr.rel (%p126) target = $region20
        $region19: #{tpu_custom_call.1} parent=15 // pred_region
          %s129 = sand.u32 %s44, 1
          %s130 = scalar_lea.sflag [#allocation7], %s129
          %s131 = sand.u32 %s44, 1
          %s132 = smul.addr %s131, 8
          %s133 = scalar_lea.vmem [#allocation6], %s132
          %s134 = sld [smem:[#allocation5 + %s27]]
          %s136 = ssub.s32 128, 128
          %137 = vsyncadd %s130, %s136
          %s138 = smul.addr %s134, 128
          %s139 = scalar_lea.hbm %s1, %s138
          %s141 = sshll.u32 %s133, 4
          %s142 = int_to_ptr.vmem [resolvable:$true] %s141
          %144 = dma.hbm_to_vmem [thread:$0]  %s139, 128, %s142, %s130
        $region20: #{tpu_custom_call.1} parent=15 // pred_fallthru
          _
        // Predicated region
        $region21: #{tpu_custom_call.1} parent=15 // pred_check
          %p145 = pneg %p80
        $region22: #{tpu_custom_call.1} parent=15 // pred_check_branch
          %147 = sbr.rel (%p145) target = $region24
        $region23: #{tpu_custom_call.1} parent=15 // pred_region
          %s148 = sand.u32 %s70, 1
          %s149 = scalar_lea.sflag [#allocation10], %s148
          %s150 = sand.u32 %s70, 1
          %s151 = smul.addr %s150, 8
          %s152 = scalar_lea.vmem [#allocation9], %s151
          %s154 = ssub.s32 128, 128
          %155 = vsyncadd %s149, %s154
          %s156 = smul.addr %s28, 128
          %s157 = scalar_lea.hbm %s2, %s156
          %s159 = sshll.u32 %s152, 4
          %s160 = int_to_ptr.vmem [resolvable:$true] %s159
          %162 = dma.hbm_to_vmem [thread:$0]  %s157, 128, %s160, %s149
        $region24: #{tpu_custom_call.1} parent=15 // pred_fallthru
          _
      $region16: #{tpu_custom_call.1} parent=5 // pred_fallthru
        _
      %p163 = scmp.le.s32.totalorder 1, %s20
      %p164 = scmp.lt.s32.totalorder %s20, 9
      %p165 = pnand %p163, %p164
      %p166 = pneg %p165
      // Predicated region
      $region25: #{tpu_custom_call.1} parent=5 // pred_check
        _
      $region26: #{tpu_custom_call.1} parent=5 // pred_check_branch
        %168 = sbr.rel (%p165) target = $region28
      $region27: #{tpu_custom_call.1} parent=5 // pred_region
        %s169 = ssub.s32 %s20, 1
        %s170 = sand.u32 %s47, 1
        %s171 = scalar_lea.sflag [#allocation7], %s170
        %s172 = sand.u32 %s47, 1
        %s173 = smul.addr %s172, 8
        %s174 = scalar_lea.vmem [#allocation6], %s173
        // Predicated region
        $region29: #{tpu_custom_call.1} parent=27 // pred_check
          %p175 = pneg %p60
        $region30: #{tpu_custom_call.1} parent=27 // pred_check_branch
          %177 = sbr.rel (%p175) target = $region32
        $region31: #{tpu_custom_call.1} parent=27 // pred_region
          %178 = dma.done %s171, 128
        $region32: #{tpu_custom_call.1} parent=27 // pred_fallthru
          _
        %s179 = sand.u32 %s73, 1
        %s180 = scalar_lea.sflag [#allocation10], %s179
        %s181 = sand.u32 %s73, 1
        %s182 = smul.addr %s181, 8
        %s183 = scalar_lea.vmem [#allocation9], %s182
        // Predicated region
        $region33: #{tpu_custom_call.1} parent=27 // pred_check
          %p184 = pneg %p86
        $region34: #{tpu_custom_call.1} parent=27 // pred_check_branch
          %186 = sbr.rel (%p184) target = $region36
        $region35: #{tpu_custom_call.1} parent=27 // pred_region
          %187 = dma.done %s180, 128
        $region36: #{tpu_custom_call.1} parent=27 // pred_fallthru
          _
        %s188 = sand.u32 %s47, 1
        %s189 = scalar_lea.sflag [#allocation7], %s188
        %s190 = sand.u32 %s47, 1
        %s191 = smul.addr %s190, 8
        %s192 = scalar_lea.vmem [#allocation6], %s191
        %p193 = pneg %p60
        %p194 = pneg %p57
        %s195 = sand.u32 %s73, 1
        %s196 = scalar_lea.sflag [#allocation10], %s195
        %s197 = sand.u32 %s73, 1
        %s198 = smul.addr %s197, 8
        %s199 = scalar_lea.vmem [#allocation9], %s198
        %p200 = pneg %p86
        %p201 = pneg %p83
        %p202 = pneg %p107
        %p203 = pneg %p104
        %s204 = sld [smem:[#allocation5 + %s29]]
        %s205 = sld [smem:[#allocation5 + %s29]]
        %p206 = scmp.eq.s32.totalorder %s29, 0
        %p207 = scmp.eq.s32.totalorder %s30, 0
        %p208 = pnand %p206, %p207
        %p209 = pneg %p208
        // Predicated region
        $region37: #{tpu_custom_call.1} parent=27 // pred_check
          _
        $region38: #{tpu_custom_call.1} parent=27 // pred_check_branch
          %211 = sbr.rel (%p208) target = $region40
        $region39: #{tpu_custom_call.1} parent=27 // pred_region
          %vm212 = vcmask 0
          %213 = vst.msk [vmem:[#allocation11] sm:$0x1] %vm212, 0.0
        $region40: #{tpu_custom_call.1} parent=27 // pred_fallthru
          _
        // Predicated region
        $region41: #{tpu_custom_call.1} parent=27 // pred_check
          %p214 = pneg %p207
        $region42: #{tpu_custom_call.1} parent=27 // pred_check_branch
          %216 = sbr.rel (%p214) target = $region44
        $region43: #{tpu_custom_call.1} parent=27 // pred_region
          %v217 = vld [vmem:[%s174] sm:$0xff]
          %218 = vmax.xlane.f32.xlu0 %v217
          %v219 = vpop.xlane.xlu0 %218
          %v220 = vrot.slane %v219, 4
          %v221 = vmax.f32 %v219, %v220
          %v222 = vrot.slane %v221, 2
          %v223 = vmax.f32 %v221, %v222
          %v224 = vrot.slane %v223, 1
          %v225 = vmax.f32 %v223, %v224
          %s226 = vtos %v225
          %v227 = vstv %s226
          %v228 = vsub.f32 %v217, %v227
          %v229 = vrcp.pop 0.05
          %v230 = vmul.f32 %v228, %v229
          %v231 = vmul.f32 %v230, 1.442695
          %v232 = vpow.pop %v231
          %233 = vadd.xlane.f32.xlu0 %v232
          %v234 = vpop.xlane.xlu0 %233
          %v235 = vrot.slane %v234, 4
          %v236 = vadd.f32 %v234, %v235
          %v237 = vrot.slane %v236, 2
          %v238 = vadd.f32 %v236, %v237
          %v239 = vrot.slane %v238, 1
          %v240 = vadd.f32 %v238, %v239
          %s241 = vtos %v240
          %v242 = vstv %s241
          %v243 = vrcp.pop %v242
          %v244 = vmul.f32 %v232, %v243
          %v245 = vrot.slane %v244, 4
          %v246 = vadd.f32 %v244, %v245
          %v247 = vrot.slane %v246, 2
          %v248 = vadd.f32 %v246, %v247
          %v249 = vrot.slane %v248, 1
          %v250 = vadd.f32 %v248, %v249
          %v251 = vrcp.pop %v250
          %v252 = vmul.f32 0.0078125, %v251
          %v253 = vmul.f32 %v244, %v252
          %254 = vadd.xlane.f32.xlu0 %v253
          %v255 = vpop.xlane.xlu0 %254
          %v256 = vrcp.pop %v255
          %v257 = vmul.f32 0.125, %v256
          %v258 = vmul.f32 %v253, %v257
          %v259 = vrot.slane %v258, 4
          %v260 = vadd.f32 %v258, %v259
          %v261 = vrot.slane %v260, 2
          %v262 = vadd.f32 %v260, %v261
          %v263 = vrot.slane %v262, 1
          %v264 = vadd.f32 %v262, %v263
          %v265 = vrcp.pop %v264
          %v266 = vmul.f32 0.0078125, %v265
          %v267 = vmul.f32 %v258, %v266
          %268 = vadd.xlane.f32.xlu0 %v267
          %v269 = vpop.xlane.xlu0 %268
          %v270 = vrcp.pop %v269
          %v271 = vmul.f32 0.125, %v270
          %v272 = vmul.f32 %v267, %v271
          %v273 = vrot.slane %v272, 4
          %v274 = vadd.f32 %v272, %v273
          %v275 = vrot.slane %v274, 2
          %v276 = vadd.f32 %v274, %v275
          %v277 = vrot.slane %v276, 1
          %v278 = vadd.f32 %v276, %v277
          %v279 = vrcp.pop %v278
          %v280 = vmul.f32 0.0078125, %v279
          %v281 = vmul.f32 %v272, %v280
          %282 = vadd.xlane.f32.xlu0 %v281
          %v283 = vpop.xlane.xlu0 %282
          %v284 = vrcp.pop %v283
          %v285 = vmul.f32 0.125, %v284
          %v286 = vmul.f32 %v281, %v285
          %287 = vadd.xlane.f32.xlu0 %v286
          %v288 = vpop.xlane.xlu0 %287
          %v289 = vrcp.pop %v288
          %v290 = vmul.f32 %v286, %v289
          %291 = vst [vmem:[#allocation3] sm:$0xff] %v290
        $region44: #{tpu_custom_call.1} parent=27 // pred_fallthru
          _
        // Predicated region
        $region45: #{tpu_custom_call.1} parent=27 // pred_check
          %p292 = pneg %p206
        $region46: #{tpu_custom_call.1} parent=27 // pred_check_branch
          %294 = sbr.rel (%p292) target = $region48
        $region47: #{tpu_custom_call.1} parent=27 // pred_region
          %v295 = vld [vmem:[%s183] sm:$0xff]
          %v296 = vrcp.pop 0.1
          %v297 = vmul.f32 %v295, %v296
          %298 = vmax.xlane.f32.xlu0 %v297
          %v299 = vpop.xlane.xlu0 %298
          %v300 = vsub.f32 %v297, %v299
          %v301 = vmul.f32 %v300, 1.442695
          %v302 = vpow.pop %v301
          %303 = vadd.xlane.f32.xlu0 %v302
          %v304 = vpop.xlane.xlu0 %303
          %v305 = vlog2.pop %v304
          %v306 = vmul.f32 %v305, 0.6931472
          %v307 = vadd.f32 %v299, %v306
          %vm308 = vcmask 7168
          %v309 = vsel %vm308, %v307, 0.0
          %310 = vadd.xlane.f32.xlu0 %v309
          %v311 = vpop.xlane.xlu0 %310
          %v312 = vrot.slane %v311, 4
          %v313 = vadd.f32 %v311, %v312
          %v314 = vrot.slane %v313, 2
          %v315 = vadd.f32 %v313, %v314
          %v316 = vrot.slane %v315, 1
          %v317 = vadd.f32 %v315, %v316
          %s318 = vtos %v317
          %v319 = vstv %s318
          %s320 = scalar_lea.vmem [#allocation2], %s30
          %vm321 = vcmask 0
          %322 = vst.msk [vmem:[%s320] sm:$0x1] %vm321, %v319
        $region48: #{tpu_custom_call.1} parent=27 // pred_fallthru
          _
        %p323 = scmp.ne.s32.totalorder %s30, %s205
        // Predicated region
        $region49: #{tpu_custom_call.1} parent=27 // pred_check
          %p324 = pneg %p323
        $region50: #{tpu_custom_call.1} parent=27 // pred_check_branch
          %326 = sbr.rel (%p324) target = $region52
        $region51: #{tpu_custom_call.1} parent=27 // pred_region
          %v327 = vld [vmem:[%s183] sm:$0xff]
          %v328 = vld [vmem:[#allocation3] sm:$0xff]
          %v329 = vmul.f32 %v328, %v327
          %330 = vadd.xlane.f32.xlu0 %v329
          %v331 = vpop.xlane.xlu0 %330
          %v332 = vrot.slane %v331, 4
          %v333 = vadd.f32 %v331, %v332
          %v334 = vrot.slane %v333, 2
          %v335 = vadd.f32 %v333, %v334
          %v336 = vrot.slane %v335, 1
          %v337 = vadd.f32 %v335, %v336
          %s338 = vtos %v337
          %v339 = vstv %s338
          %s340 = scalar_lea.vmem [#allocation2], %s30
          %v341 = vld [vmem:[%s340] sm:$0x1]
          %v342 = vmul.f32 %v341, 0.125
          %v343 = vmul.f32 %v339, 1.25
          %v344 = vsub.f32 %v342, %v343
          %v345 = vld [vmem:[#allocation11] sm:$0x1]
          %v346 = vmul.f32 %v344, 0.16666667
          %v347 = vadd.f32 %v345, %v346
          %vm348 = vcmask 0
          %349 = vst.msk [vmem:[#allocation11] sm:$0x1] %vm348, %v347
        $region52: #{tpu_custom_call.1} parent=27 // pred_fallthru
          _
        // Predicated region
        $region53: #{tpu_custom_call.1} parent=27 // pred_check
          %p350 = pneg %p104
        $region54: #{tpu_custom_call.1} parent=27 // pred_check_branch
          %352 = sbr.rel (%p350) target = $region56
        $region55: #{tpu_custom_call.1} parent=27 // pred_region
          %s354 = ssub.s32 16, 16
          %355 = vsyncadd [#allocation8], %s354
          %s357 = sshll.u32 [#allocation11], 4
          %s358 = int_to_ptr.vmem [resolvable:$true] %s357
          %360 = dma.vmem_to_hbm [thread:$0]  %s358, 16, %s3, [#allocation8]
        $region56: #{tpu_custom_call.1} parent=27 // pred_fallthru
          _
        // Predicated region
        $region57: #{tpu_custom_call.1} parent=27 // pred_check
          %p361 = pneg %p104
        $region58: #{tpu_custom_call.1} parent=27 // pred_check_branch
          %363 = sbr.rel (%p361) target = $region60
        $region59: #{tpu_custom_call.1} parent=27 // pred_region
          %364 = dma.done [#allocation8], 16
        $region60: #{tpu_custom_call.1} parent=27 // pred_fallthru
          _
      $region28: #{tpu_custom_call.1} parent=5 // pred_fallthru
        _
      %p365 = scmp.le.s32.totalorder 2, %s20
      // Predicated region
      $region61: #{tpu_custom_call.1} parent=5 // pred_check
        %p366 = pneg %p365
      $region62: #{tpu_custom_call.1} parent=5 // pred_check_branch
        %368 = sbr.rel (%p366) target = $region64
      $region63: #{tpu_custom_call.1} parent=5 // pred_region
        %s369 = ssub.s32 %s20, 2
      $region64: #{tpu_custom_call.1} parent=5 // pred_fallthru
        _
    $region6: #{tpu_custom_call.1} parent=1 // loop_footer
      %s24 = sadd.s32 1, %s20
    $region7: #{tpu_custom_call.1} parent=1 // loop_footer_branch
      %19 = sbr.rel target = $region3
    $region8: #{tpu_custom_call.1} parent=1 // loop_exit
      _
    %370 = vsyncpa [#allocation7], 1
    %s371 = scalar_lea.sflag [#allocation7], 1
    %372 = vsyncpa %s371, 1
    %373 = vsyncpa [#allocation10], 1
    %s374 = scalar_lea.sflag [#allocation10], 1
    %375 = vsyncpa %s374, 1
    %376 = vsyncpa [#allocation8], 1
    %s377 = scalar_lea.sflag [#allocation8], 1
    %378 = vsyncpa %s377, 1

</llo_original>
